<compile_context>
chip_gen: v6e
topology: v6e:2x2x1
jax: 0.10.0
libtpu: 0.0.40
codegen_flags: <defaults>
</compile_context>

<pallas_src>
import functools

import jax
import jax.numpy as jnp
from jax import lax
from jax.experimental import pallas as pl
from jax.experimental.pallas import tpu as pltpu

EPS = 1e-5
NEG_LARGE = -1e30          # bias on padded logit lanes -> exp() == 0 under softmax
LANE = 128
SUBLANE = 8
MIN_ROWS_PER_CORE = 256    # only force a >=2-step grid (v7x 2-TC) when tiles stay this big


def _round_up(n, m):
    return ((n + m - 1) // m) * m


def fcnn_bn_kernel(x_ref, w1_ref, b1_ref, w2_ref, b2_ref, out_ref):
    # x arrives f32 straight from HBM; cast to bf16 in VMEM for the MXU.
    x = x_ref[...].astype(w1_ref.dtype)

    # fc1 (bn1 pre-folded) + ReLU.  Dropout = identity (eval).
    h = jnp.dot(x, w1_ref[...], preferred_element_type=jnp.float32)
    h = jnp.maximum(h + b1_ref[...], 0.0)

    # fc2 (bn2 pre-folded).  Logits are k_pad=128 wide in VMEM; pad lanes carry -1e30 bias.
    logits = jnp.dot(h.astype(w2_ref.dtype), w2_ref[...],
                     preferred_element_type=jnp.float32) + b2_ref[...]

    # Softmax over dim=1 (full-vreg reductions over 128 lanes; pad lanes contribute exp()=0).
    m = jnp.max(logits, axis=-1, keepdims=True)
    e = jnp.exp(logits - m)
    denom = jnp.sum(e, axis=-1, keepdims=True)
    probs = e / denom

    # Write back only the K real columns (out block last dim == full array dim).
    out_ref[...] = probs[:, :out_ref.shape[-1]].astype(out_ref.dtype)


@functools.partial(jax.jit, static_argnames=("tile_b",))
def fcnn_batchnorm_forward(x, params, *, tile_b=2048):
    """x: (B, input_dim) (or any shape reshaping to that). Returns softmax probs (B, K) f32."""
    x = x.reshape(x.shape[0], -1).astype(jnp.float32)
    B, input_dim = x.shape
    hidden = params["w1"].shape[0]
    K = params["w2"].shape[0]

    # ---- Fold BatchNorm (affine=False, running stats) into the Linear layers (f32) ----
    inv1 = lax.rsqrt(params["bn1_var"].astype(jnp.float32) + EPS)        # (input_dim,)
    inv2 = lax.rsqrt(params["bn2_var"].astype(jnp.float32) + EPS)        # (hidden,)
    w1_t = params["w1"].astype(jnp.float32).T                            # (input_dim, hidden)
    w2_t = params["w2"].astype(jnp.float32).T                            # (hidden, K)
    w1_eff = w1_t * inv1[:, None]
    b1_eff = params["b1"].astype(jnp.float32) - (params["bn1_mean"].astype(jnp.float32) * inv1) @ w1_t
    w2_eff = w2_t * inv2[:, None]
    b2_eff = params["b2"].astype(jnp.float32) - (params["bn2_mean"].astype(jnp.float32) * inv2) @ w2_t

    # ---- Pad only the (tiny) weights: hidden/output lanes up to 128; x stays unpadded ----
    h_pad = _round_up(hidden, LANE)
    k_pad = _round_up(K, LANE)
    w1_p = (jnp.zeros((input_dim, h_pad), jnp.float32)
            .at[:, :hidden].set(w1_eff).astype(jnp.bfloat16))
    b1_p = jnp.zeros((1, h_pad), jnp.float32).at[0, :hidden].set(b1_eff)
    w2_p = (jnp.zeros((h_pad, k_pad), jnp.float32)
            .at[:hidden, :K].set(w2_eff).astype(jnp.bfloat16))
    b2_p = jnp.full((1, k_pad), NEG_LARGE, jnp.float32).at[0, :K].set(b2_eff)

    # ---- Batch tiling derived from B (padding < 8 rows per tile); >=2 even steps for v7x ----
    num_tiles = max(1, pl.cdiv(B, int(tile_b)))
    if B >= 2 * MIN_ROWS_PER_CORE:
        num_tiles = max(num_tiles, 2)
        num_tiles += num_tiles % 2          # even step count balances the two v7x TCs
    tb = _round_up(pl.cdiv(B, num_tiles), SUBLANE)
    grid_b = pl.cdiv(B, tb)                 # partial last block: OOB reads padded, writes dropped

    out = pl.pallas_call(
        fcnn_bn_kernel,
        out_shape=jax.ShapeDtypeStruct((B, K), jnp.float32),
        grid=(grid_b,),
        in_specs=[
            pl.BlockSpec((tb, input_dim), lambda i: (i, 0)),   # x   : streamed f32 per tile
            pl.BlockSpec((input_dim, h_pad), lambda i: (0, 0)),  # w1  : VMEM-resident bf16
            pl.BlockSpec((1, h_pad), lambda i: (0, 0)),          # b1  : f32
            pl.BlockSpec((h_pad, k_pad), lambda i: (0, 0)),      # w2  : bf16
            pl.BlockSpec((1, k_pad), lambda i: (0, 0)),          # b2  : f32 (-1e30 on pad lanes)
        ],
        out_specs=pl.BlockSpec((tb, K), lambda i: (i, 0)),       # only the K real columns
        compiler_params=pltpu.CompilerParams(
            dimension_semantics=("parallel",),                   # megacore / v7x 2-TC sharding
        ),
    )(x, w1_p, b1_p, w2_p, b2_p)

    return out


def reference_forward(x, params):
    """Pure-JAX f32 reference of the eval-mode PyTorch forward (revision=False)."""
    xf = x.reshape(x.shape[0], -1).astype(jnp.float32)
    xn = (xf - params["bn1_mean"]) / jnp.sqrt(params["bn1_var"] + EPS)
    h = jnp.maximum(xn @ params["w1"].T + params["b1"], 0.0)
    hn = (h - params["bn2_mean"]) / jnp.sqrt(params["bn2_var"] + EPS)
    logits = hn @ params["w2"].T + params["b2"]
    return jax.nn.softmax(logits, axis=1)


def init_params(key, input_dim=124, hidden=128, K=10):
    """Deterministic init mimicking PyTorch nn.Linear defaults, with non-trivial BN stats."""
    ks = jax.random.split(key, 8)
    bound1 = 1.0 / jnp.sqrt(input_dim)
    bound2 = 1.0 / jnp.sqrt(hidden)
    return {
        "w1": jax.random.uniform(ks[0], (hidden, input_dim), jnp.float32, -bound1, bound1),
        "b1": jax.random.uniform(ks[1], (hidden,), jnp.float32, -bound1, bound1),
        "w2": jax.random.uniform(ks[2], (K, hidden), jnp.float32, -bound2, bound2),
        "b2": jax.random.uniform(ks[3], (K,), jnp.float32, -bound2, bound2),
        # BatchNorm1d(affine=False) running stats (non-default so the fold is exercised).
        "bn1_mean": 0.1 * jax.random.normal(ks[4], (input_dim,), jnp.float32),
        "bn1_var": jax.random.uniform(ks[5], (input_dim,), jnp.float32, 0.5, 1.5),
        "bn2_mean": 0.1 * jax.random.normal(ks[6], (hidden,), jnp.float32),
        "bn2_var": jax.random.uniform(ks[7], (hidden,), jnp.float32, 0.5, 1.5),
    }


if __name__ == "__main__":
    B, INPUT_DIM, K = 8, 124, 10
    key = jax.random.PRNGKey(0)
    kx, kp = jax.random.split(key)

    x = jax.random.normal(kx, (B, INPUT_DIM), jnp.float32)
    params = init_params(kp, input_dim=INPUT_DIM, hidden=128, K=K)

    out = jax.block_until_ready(fcnn_batchnorm_forward(x, params))
    ref = reference_forward(x, params)

    # Sanity: shape, softmax rows sum to 1 (f32-exact division), values in [0,1],
    # and agreement with the pure-JAX reference (bf16 MXU operands -> loose tolerance).
    assert out.shape == (B, K)
    assert jnp.allclose(jnp.sum(out, axis=1), 1.0, atol=1e-5)
    assert jnp.all(out >= 0.0)
    assert jnp.allclose(out, ref, atol=2e-2)

    print("KERNEL_OK")
</pallas_src>

<mosaic_0001>
module attributes {stable_mosaic.version = 11 : i64} {
  func.func @fcnn_bn_kernel(%arg0: i32, %arg1: memref<8x124xf32, #tpu.memory_space<vmem>>, %arg2: memref<124x128xbf16, #tpu.memory_space<vmem>>, %arg3: memref<1x128xf32, #tpu.memory_space<vmem>>, %arg4: memref<128x128xbf16, #tpu.memory_space<vmem>>, %arg5: memref<1x128xf32, #tpu.memory_space<vmem>>, %arg6: memref<8x10xf32, #tpu.memory_space<vmem>>) attributes {dimension_semantics = [#tpu.dimension_semantics<parallel>], iteration_bounds = array<i64: 1>, scalar_prefetch = 0 : i64, scratch_operands = 0 : i64, tpu.core_type = #tpu.core_type<tc>, window_params = [{transform_indices = @transform_0, window_bounds = array<i64: 8, 124>}, {pipeline_mode = #tpu.pipeline_mode<synchronous>, transform_indices = @transform_1, window_bounds = array<i64: 124, 128>}, {pipeline_mode = #tpu.pipeline_mode<synchronous>, transform_indices = @transform_2, window_bounds = array<i64: 1, 128>}, {pipeline_mode = #tpu.pipeline_mode<synchronous>, transform_indices = @transform_3, window_bounds = array<i64: 128, 128>}, {pipeline_mode = #tpu.pipeline_mode<synchronous>, transform_indices = @transform_4, window_bounds = array<i64: 1, 128>}, {transform_indices = @transform_5, window_bounds = array<i64: 8, 10>}]} {
    %c0 = arith.constant 0 : index
    %c0_0 = arith.constant 0 : index
    %0 = vector.load %arg1[%c0, %c0_0] : memref<8x124xf32, #tpu.memory_space<vmem>>, vector<8x124xf32>
    %1 = arith.truncf %0 : vector<8x124xf32> to vector<8x124xbf16>
    %c0_1 = arith.constant 0 : index
    %c0_2 = arith.constant 0 : index
    %2 = vector.load %arg2[%c0_1, %c0_2] : memref<124x128xbf16, #tpu.memory_space<vmem>>, vector<124x128xbf16>
    %cst = arith.constant dense<0.000000e+00> : vector<8x128xf32>
    %3 = tpu.matmul %1, %2, %cst {dimension_numbers = #tpu.dot_dimension_numbers<[1], [0], [0], [1], [0, 0, 1, 1], [], []>} : vector<8x124xbf16>, vector<124x128xbf16>, vector<8x128xf32> -> vector<8x128xf32>
    %c0_3 = arith.constant 0 : index
    %c0_4 = arith.constant 0 : index
    %4 = vector.load %arg3[%c0_3, %c0_4] : memref<1x128xf32, #tpu.memory_space<vmem>>, vector<1x128xf32>
    %5 = vector.broadcast %4 : vector<1x128xf32> to vector<8x128xf32>
    %6 = arith.addf %3, %5 : vector<8x128xf32>
    %cst_5 = arith.constant 0.000000e+00 : f32
    %7 = vector.broadcast %cst_5 : f32 to vector<8x128xf32>
    %8 = arith.maximumf %6, %7 : vector<8x128xf32>
    %9 = arith.truncf %8 : vector<8x128xf32> to vector<8x128xbf16>
    %c0_6 = arith.constant 0 : index
    %c0_7 = arith.constant 0 : index
    %10 = vector.load %arg4[%c0_6, %c0_7] : memref<128x128xbf16, #tpu.memory_space<vmem>>, vector<128x128xbf16>
    %cst_8 = arith.constant dense<0.000000e+00> : vector<8x128xf32>
    %11 = tpu.matmul %9, %10, %cst_8 {dimension_numbers = #tpu.dot_dimension_numbers<[1], [0], [0], [1], [0, 0, 1, 1], [], []>} : vector<8x128xbf16>, vector<128x128xbf16>, vector<8x128xf32> -> vector<8x128xf32>
    %c0_9 = arith.constant 0 : index
    %c0_10 = arith.constant 0 : index
    %12 = vector.load %arg5[%c0_9, %c0_10] : memref<1x128xf32, #tpu.memory_space<vmem>>, vector<1x128xf32>
    %13 = vector.broadcast %12 : vector<1x128xf32> to vector<8x128xf32>
    %14 = arith.addf %11, %13 : vector<8x128xf32>
    %cst_11 = arith.constant dense<0xFF800000> : vector<8xf32>
    %15 = vector.multi_reduction <maximumf>, %14, %cst_11 [1] : vector<8x128xf32> to vector<8xf32>
    %16 = vector.shape_cast %15 : vector<8xf32> to vector<8x1xf32>
    %17 = vector.broadcast %16 : vector<8x1xf32> to vector<8x128xf32>
    %18 = arith.subf %14, %17 : vector<8x128xf32>
    %19 = math.exp %18 : vector<8x128xf32>
    %cst_12 = arith.constant dense<0.000000e+00> : vector<8xf32>
    %20 = vector.multi_reduction <add>, %19, %cst_12 [1] : vector<8x128xf32> to vector<8xf32>
    %21 = vector.shape_cast %20 : vector<8xf32> to vector<8x1xf32>
    %22 = vector.broadcast %21 : vector<8x1xf32> to vector<8x128xf32>
    %23 = arith.divf %19, %22 : vector<8x128xf32>
    %24 = vector.extract_strided_slice %23 {offsets = [0, 0], sizes = [8, 10], strides = [1, 1]} : vector<8x128xf32> to vector<8x10xf32>
    %c0_13 = arith.constant 0 : index
    %c0_14 = arith.constant 0 : index
    %25 = vector.load %arg6[%c0_13, %c0_14] : memref<8x10xf32, #tpu.memory_space<vmem>>, vector<8x10xf32>
    tpu.vector_store %arg6[%c0_13, %c0_14], %24 {strides = array<i32>} : memref<8x10xf32, #tpu.memory_space<vmem>>, vector<8x10xf32>,
    return
  }
  func.func @transform_0(%arg0: i32) -> (i32, i32) {
    %c0_i32 = arith.constant 0 : i32
    %c0_i32_0 = arith.constant 0 : i32
    return %arg0, %c0_i32 : i32, i32
  }
  func.func @transform_1(%arg0: i32) -> (i32, i32) {
    %c0_i32 = arith.constant 0 : i32
    %c0_i32_0 = arith.constant 0 : i32
    %c0_i32_1 = arith.constant 0 : i32
    return %c0_i32, %c0_i32_0 : i32, i32
  }
  func.func @transform_2(%arg0: i32) -> (i32, i32) {
    %c0_i32 = arith.constant 0 : i32
    %c0_i32_0 = arith.constant 0 : i32
    %c0_i32_1 = arith.constant 0 : i32
    return %c0_i32, %c0_i32_0 : i32, i32
  }
  func.func @transform_3(%arg0: i32) -> (i32, i32) {
    %c0_i32 = arith.constant 0 : i32
    %c0_i32_0 = arith.constant 0 : i32
    %c0_i32_1 = arith.constant 0 : i32
    return %c0_i32, %c0_i32_0 : i32, i32
  }
  func.func @transform_4(%arg0: i32) -> (i32, i32) {
    %c0_i32 = arith.constant 0 : i32
    %c0_i32_0 = arith.constant 0 : i32
    %c0_i32_1 = arith.constant 0 : i32
    return %c0_i32, %c0_i32_0 : i32, i32
  }
  func.func @transform_5(%arg0: i32) -> (i32, i32) {
    %c0_i32 = arith.constant 0 : i32
    %c0_i32_0 = arith.constant 0 : i32
    return %arg0, %c0_i32 : i32, i32
  }
}

</mosaic_0001>

<llo_original>
// kernel: fcnn_batchnorm_forward.1
$region0: #{fcnn_batchnorm_forward.1}
  #allocation0 [shape = 'u32[]', space=smem, size = 0x4, offset = 0x4, fixed_abs, tag = 'smem constant byte address 0x4 - core index']
  #allocation1 [shape = 'u32[144,128]{1,0:T(1,128)}', space=vmem, size = 0x12000, scoped, tag = 'internal scratch']
  %s0 = inlined_call_operand.vmem [shape: f32[8,124], index: 0, kind: input, shape index: {}]
  %s1 = inlined_call_operand.vmem [shape: bf16[124,128], index: 1, kind: input, shape index: {}]
  %s2 = inlined_call_operand.vmem [shape: f32[1,128], index: 2, kind: input, shape index: {}]
  %s3 = inlined_call_operand.vmem [shape: bf16[128,128], index: 3, kind: input, shape index: {}]
  %s4 = inlined_call_operand.vmem [shape: f32[1,128], index: 4, kind: input, shape index: {}]
  %s5 = inlined_call_operand.hbm [shape: f32[8,10], index: 5, kind: output, shape index: {}]
  %s6 = sld [smem:[#allocation0]]
  $region30: #{fcnn_batchnorm_forward.1} parent=0
    _
  %s8 = ssub.s32 1, %s6
  %s9 = scalar_select 0, %s8, %s6
  $region1: #{fcnn_batchnorm_forward.1} parent=0
    #allocation2 [shape = 'u8[4096]{0}', space=vmem, size = 0x1000, scoped, tag = 'output window, operand 0, single buffered']
    #allocation3 [shape = 's32[1]{0}', space=sflag, size = 0x4, scoped, tag = 'scoped memory for fcnn_batchnorm_forward.1']
    %10 = vsyncpa [#allocation3], 0
    // Predicated region
    $region2: #{fcnn_batchnorm_forward.1} parent=1 // pred_check
      _
    $region3: #{fcnn_batchnorm_forward.1} parent=1 // pred_check_branch
      %12 = sbr.rel (0) target = $region5
    $region4: #{fcnn_batchnorm_forward.1} parent=1 // pred_region
      _
    $region5: #{fcnn_batchnorm_forward.1} parent=1 // pred_fallthru
      _
    // Predicated region
    $region6: #{fcnn_batchnorm_forward.1} parent=1 // pred_check
      _
    $region7: #{fcnn_batchnorm_forward.1} parent=1 // pred_check_branch
      %14 = sbr.rel (0) target = $region9
    $region8: #{fcnn_batchnorm_forward.1} parent=1 // pred_region
      _
    $region9: #{fcnn_batchnorm_forward.1} parent=1 // pred_fallthru
      _
    // Predicated region
    $region10: #{fcnn_batchnorm_forward.1} parent=1 // pred_check
      _
    $region11: #{fcnn_batchnorm_forward.1} parent=1 // pred_check_branch
      %16 = sbr.rel (0) target = $region13
    $region12: #{fcnn_batchnorm_forward.1} parent=1 // pred_region
      _
    $region13: #{fcnn_batchnorm_forward.1} parent=1 // pred_fallthru
      _
    // Predicated region
    $region14: #{fcnn_batchnorm_forward.1} parent=1 // pred_check
      _
    $region15: #{fcnn_batchnorm_forward.1} parent=1 // pred_check_branch
      %18 = sbr.rel (0) target = $region17
    $region16: #{fcnn_batchnorm_forward.1} parent=1 // pred_region
      _
    $region17: #{fcnn_batchnorm_forward.1} parent=1 // pred_fallthru
      _
    // Predicated region
    $region18: #{fcnn_batchnorm_forward.1} parent=1 // pred_check
      _
    $region19: #{fcnn_batchnorm_forward.1} parent=1 // pred_check_branch
      %20 = sbr.rel (0) target = $region21
    $region20: #{fcnn_batchnorm_forward.1} parent=1 // pred_region
      _
    $region21: #{fcnn_batchnorm_forward.1} parent=1 // pred_fallthru
      _
    %v22 = vld [vmem:[%s0] sm:$0xff]
    %v23 = vpack.c.bf16 %v22, %v22
    %v24 = vld [vmem:[%s1] sm:$0xf]
    %v25 = vld [vmem:[%s1 + $0x4] sm:$0xf]
    %v26 = vld [vmem:[%s1 + $0x8] sm:$0xf]
    %v27 = vld [vmem:[%s1 + $0xc] sm:$0xf]
    %v28 = vld [vmem:[%s1 + $0x10] sm:$0xf]
    %v29 = vld [vmem:[%s1 + $0x14] sm:$0xf]
    %v30 = vld [vmem:[%s1 + $0x18] sm:$0xf]
    %v31 = vld [vmem:[%s1 + $0x1c] sm:$0xf]
    %v32 = vld [vmem:[%s1 + $0x20] sm:$0xf]
    %v33 = vld [vmem:[%s1 + $0x24] sm:$0xf]
    %v34 = vld [vmem:[%s1 + $0x28] sm:$0xf]
    %v35 = vld [vmem:[%s1 + $0x2c] sm:$0xf]
    %v36 = vld [vmem:[%s1 + $0x30] sm:$0xf]
    %v37 = vld [vmem:[%s1 + $0x34] sm:$0xf]
    %v38 = vld [vmem:[%s1 + $0x38] sm:$0xf]
    %v39 = vld [vmem:[%s1 + $0x3c] sm:$0x3]
    %v40 = vld [vmem:[%s2] sm:$0x1]
    %v42 = vlaneseq
    %v43 = vshrl.u32 %v42, 7
    %v44 = vsub.s32 0, %v43
    %v45 = vrot.slane %v40, %v44
    %v63 = vunpack.c.l.b16 %v24
    %v64 = vunpack.c.l.b16 %v25
    %v65 = vunpack.c.l.b16 %v26
    %v66 = vunpack.c.l.b16 %v27
    %v67 = vunpack.c.l.b16 %v28
    %v68 = vunpack.c.l.b16 %v29
    %v69 = vunpack.c.l.b16 %v30
    %v70 = vunpack.c.l.b16 %v31
    %v71 = vunpack.c.l.b16 %v32
    %v72 = vunpack.c.l.b16 %v33
    %v73 = vunpack.c.l.b16 %v34
    %v74 = vunpack.c.l.b16 %v35
    %v75 = vunpack.c.l.b16 %v36
    %v76 = vunpack.c.l.b16 %v37
    %v77 = vunpack.c.l.b16 %v38
    %v78 = vunpack.c.l.b16 %v39
    %v79 = vpack.c.b16 %v64, %v63
    %v80 = vpack.c.b16 %v66, %v65
    %v81 = vpack.c.b16 %v68, %v67
    %v82 = vpack.c.b16 %v70, %v69
    %v83 = vpack.c.b16 %v72, %v71
    %v84 = vpack.c.b16 %v74, %v73
    %v85 = vpack.c.b16 %v76, %v75
    %v86 = vpack.c.b16 %v78, %v77
    %vm94 = vcmask 1014784
    %v96 = vsel %vm94, %v23, 0
    %vm98 = vcmask 1045504
    %v100 = vsel %vm98, %v86, 0
    %102 = vmatprep.subr.bf16.mxu0 0
    %103 = vmatpush1.bf16.msra.mxu0 %v100
    %104 = vmatprep.subr.bf16.mxu0 0
    %105 = vmatpush1.bf16.msra.mxu0 %v85
    %106 = vmatprep.subr.bf16.mxu0 0
    %107 = vmatpush1.bf16.msra.mxu0 %v84
    %108 = vmatprep.subr.bf16.mxu0 0
    %109 = vmatpush1.bf16.msra.mxu0 %v83
    %110 = vmatprep.subr.bf16.mxu0 0
    %111 = vmatpush1.bf16.msra.mxu0 %v82
    %112 = vmatprep.subr.bf16.mxu0 0
    %113 = vmatpush1.bf16.msra.mxu0 %v81
    %114 = vmatprep.subr.bf16.mxu0 0
    %115 = vmatpush1.bf16.msra.mxu0 %v80
    %116 = vmatprep.subr.bf16.mxu0 0
    %117 = vmatpush1.bf16.msra.mxu0 %v79
    %118 = vmatprep.subr.bf16.mxu0 0
    %119 = vmatpush2.bf16.msra.mxu0 0
    %120 = vmatprep.subr.bf16.mxu0 0
    %121 = vmatpush2.bf16.msra.mxu0 0
    %122 = vmatprep.subr.bf16.mxu0 0
    %123 = vmatpush2.bf16.msra.mxu0 0
    %124 = vmatprep.subr.bf16.mxu0 0
    %125 = vmatpush2.bf16.msra.mxu0 0
    %126 = vmatprep.subr.bf16.mxu0 0
    %127 = vmatpush2.bf16.msra.mxu0 0
    %128 = vmatprep.subr.bf16.mxu0 0
    %129 = vmatpush2.bf16.msra.mxu0 0
    %130 = vmatprep.subr.bf16.mxu0 0
    %131 = vmatpush2.bf16.msra.mxu0 0
    %132 = vmatprep.subr.bf16.mxu0 0
    %133 = vmatpush2.bf16.msra.mxu0 0
    %134 = vmatprep.mubr.bf16.mxu0 0
    %135 = vmatmul.mubr.bf16.gmra.mxu0 %v96
    %v136 = vpop.f32.mrf.mxu0
    %v137 = vadd.f32 %v45, %v136
    %v138 = vpop.f32.mrf.mxu0
    %v139 = vpop.f32.mrf.mxu0
    %v140 = vpop.f32.mrf.mxu0
    %141 = vdwg.mxu0
    %v142 = vmax.f32 %v137, 0.0
    %v143 = vpack.c.bf16 %v142, %v142
    %v144 = vld [vmem:[%s3] sm:$0xf]
    %v145 = vld [vmem:[%s3 + $0x4] sm:$0xf]
    %v146 = vld [vmem:[%s3 + $0x8] sm:$0xf]
    %v147 = vld [vmem:[%s3 + $0xc] sm:$0xf]
    %v148 = vld [vmem:[%s3 + $0x10] sm:$0xf]
    %v149 = vld [vmem:[%s3 + $0x14] sm:$0xf]
    %v150 = vld [vmem:[%s3 + $0x18] sm:$0xf]
    %v151 = vld [vmem:[%s3 + $0x1c] sm:$0xf]
    %v152 = vld [vmem:[%s3 + $0x20] sm:$0xf]
    %v153 = vld [vmem:[%s3 + $0x24] sm:$0xf]
    %v154 = vld [vmem:[%s3 + $0x28] sm:$0xf]
    %v155 = vld [vmem:[%s3 + $0x2c] sm:$0xf]
    %v156 = vld [vmem:[%s3 + $0x30] sm:$0xf]
    %v157 = vld [vmem:[%s3 + $0x34] sm:$0xf]
    %v158 = vld [vmem:[%s3 + $0x38] sm:$0xf]
    %v159 = vld [vmem:[%s3 + $0x3c] sm:$0xf]
    %v160 = vld [vmem:[%s4] sm:$0x1]
    %v162 = vlaneseq
    %v163 = vshrl.u32 %v162, 7
    %v164 = vsub.s32 0, %v163
    %v165 = vrot.slane %v160, %v164
    %v183 = vunpack.c.l.b16 %v144
    %v184 = vunpack.c.l.b16 %v145
    %v185 = vunpack.c.l.b16 %v146
    %v186 = vunpack.c.l.b16 %v147
    %v187 = vunpack.c.l.b16 %v148
    %v188 = vunpack.c.l.b16 %v149
    %v189 = vunpack.c.l.b16 %v150
    %v190 = vunpack.c.l.b16 %v151
    %v191 = vunpack.c.l.b16 %v152
    %v192 = vunpack.c.l.b16 %v153
    %v193 = vunpack.c.l.b16 %v154
    %v194 = vunpack.c.l.b16 %v155
    %v195 = vunpack.c.l.b16 %v156
    %v196 = vunpack.c.l.b16 %v157
    %v197 = vunpack.c.l.b16 %v158
    %v198 = vunpack.c.l.b16 %v159
    %v199 = vpack.c.b16 %v184, %v183
    %v200 = vpack.c.b16 %v186, %v185
    %v201 = vpack.c.b16 %v188, %v187
    %v202 = vpack.c.b16 %v190, %v189
    %v203 = vpack.c.b16 %v192, %v191
    %v204 = vpack.c.b16 %v194, %v193
    %v205 = vpack.c.b16 %v196, %v195
    %v206 = vpack.c.b16 %v198, %v197
    %215 = vmatprep.subr.bf16.mxu0 0
    %216 = vmatpush1.bf16.msra.mxu0 %v206
    %217 = vmatprep.subr.bf16.mxu0 0
    %218 = vmatpush1.bf16.msra.mxu0 %v205
    %219 = vmatprep.subr.bf16.mxu0 0
    %220 = vmatpush1.bf16.msra.mxu0 %v204
    %221 = vmatprep.subr.bf16.mxu0 0
    %222 = vmatpush1.bf16.msra.mxu0 %v203
    %223 = vmatprep.subr.bf16.mxu0 0
    %224 = vmatpush1.bf16.msra.mxu0 %v202
    %225 = vmatprep.subr.bf16.mxu0 0
    %226 = vmatpush1.bf16.msra.mxu0 %v201
    %227 = vmatprep.subr.bf16.mxu0 0
    %228 = vmatpush1.bf16.msra.mxu0 %v200
    %229 = vmatprep.subr.bf16.mxu0 0
    %230 = vmatpush1.bf16.msra.mxu0 %v199
    %231 = vmatprep.subr.bf16.mxu0 0
    %232 = vmatpush2.bf16.msra.mxu0 0
    %233 = vmatprep.subr.bf16.mxu0 0
    %234 = vmatpush2.bf16.msra.mxu0 0
    %235 = vmatprep.subr.bf16.mxu0 0
    %236 = vmatpush2.bf16.msra.mxu0 0
    %237 = vmatprep.subr.bf16.mxu0 0
    %238 = vmatpush2.bf16.msra.mxu0 0
    %239 = vmatprep.subr.bf16.mxu0 0
    %240 = vmatpush2.bf16.msra.mxu0 0
    %241 = vmatprep.subr.bf16.mxu0 0
    %242 = vmatpush2.bf16.msra.mxu0 0
    %243 = vmatprep.subr.bf16.mxu0 0
    %244 = vmatpush2.bf16.msra.mxu0 0
    %245 = vmatprep.subr.bf16.mxu0 0
    %246 = vmatpush2.bf16.msra.mxu0 0
    %247 = vmatprep.mubr.bf16.mxu0 0
    %248 = vmatmul.mubr.bf16.gmra.mxu0 %v143
    %v249 = vpop.f32.mrf.mxu0
    %v250 = vadd.f32 %v165, %v249
    %v251 = vpop.f32.mrf.mxu0
    %v252 = vpop.f32.mrf.mxu0
    %v253 = vpop.f32.mrf.mxu0
    %254 = vdwg.mxu0
    %255 = vmax.xlane.f32.xlu0 %v250
    %v256 = vpop.xlane.xlu0 %255
    %v257 = vsub.f32 %v250, %v256
    %v258 = vmul.f32 %v257, 1.442695
    %v259 = vpow.pop %v258
    %260 = vadd.xlane.f32.xlu0 %v259
    %v261 = vpop.xlane.xlu0 %260
    %v262 = vrcp.pop %v261
    %v263 = vmul.f32 %v259, %v262
    %vm264 = vcmask 80896
    %265 = vst.msk [vmem:[#allocation2] sm:$0xff] %vm264, %v263
    // Predicated region
    $region22: #{fcnn_batchnorm_forward.1} parent=1 // pred_check
      _
    $region23: #{fcnn_batchnorm_forward.1} parent=1 // pred_check_branch
      %267 = sbr.rel (0) target = $region25
    $region24: #{fcnn_batchnorm_forward.1} parent=1 // pred_region
      %s269 = ssub.s32 128, 128
      %270 = vsyncadd [#allocation3], %s269
      %s272 = sshll.u32 [#allocation2], 4
      %s273 = int_to_ptr.vmem [resolvable:$true] %s272
      %275 = dma.vmem_to_hbm [thread:$0]  %s273, 128, %s5, [#allocation3]
    $region25: #{fcnn_batchnorm_forward.1} parent=1 // pred_fallthru
      _
    // Predicated region
    $region26: #{fcnn_batchnorm_forward.1} parent=1 // pred_check
      _
    $region27: #{fcnn_batchnorm_forward.1} parent=1 // pred_check_branch
      %277 = sbr.rel (0) target = $region29
    $region28: #{fcnn_batchnorm_forward.1} parent=1 // pred_region
      %278 = dma.done [#allocation3], 128
    $region29: #{fcnn_batchnorm_forward.1} parent=1 // pred_fallthru
      _
    %279 = vsyncpa [#allocation3], 1

</llo_original>
